<compile_context>
chip_gen: v5e
topology: v5e:2x2
jax: 0.10.0
libtpu: 0.0.40
codegen_flags: <defaults>
</compile_context>

<pallas_src>
import functools
import math

import jax
import jax.numpy as jnp
from jax.experimental import pallas as pl
from jax.experimental.pallas import tpu as pltpu


def _dirichlet_kernel(x_ref, out_ref, acc_ref, *, b_size):
    """One (B, tile_n) block of the reshaped/padded input.

    x_ref  : (B, tile_n) VMEM input block
    out_ref: (1, 1) SMEM partial-sum output slot (one per parallel grid index)
    acc_ref: (1, 1) SMEM scalar accumulator (persists across the inner axis)
    """
    i = pl.program_id(1)

    @pl.when(i == 0)
    def _():
        acc_ref[0, 0] = jnp.float32(0.0)

    x = x_ref[...].astype(jnp.float32)                        # (B, tile_n)
    # numerically-stable log-sum-exp along axis 0 (the softmax axis)
    m = jnp.max(x, axis=0, keepdims=True)                     # (1, tile_n)
    lse = jnp.log(jnp.sum(jnp.exp(x - m), axis=0, keepdims=True)) + m
    # sum_{b,c} log_softmax(x)[b,c] over this block = sum(x) - B * sum(lse)
    partial = jnp.sum(x) - jnp.float32(b_size) * jnp.sum(lse)
    acc_ref[0, 0] += partial

    @pl.when(i == pl.num_programs(1) - 1)
    def _():
        out_ref[0, 0] = acc_ref[0, 0]


def _round_up(x, m):
    return (x + m - 1) // m * m


def _tpu_budget():
    """(vmem_limit_bytes, num_tensorcores) chosen from the device generation."""
    kind = ""
    try:
        kind = jax.devices()[0].device_kind.lower()
    except Exception:
        pass
    if "v7" in kind or "7x" in kind:
        # v7x: 64 MiB physical VMEM, 2 TensorCores per chip.
        return 48 << 20, 2
    # v5e / v6e: 128 MiB physical VMEM, 1 TensorCore per chip.
    return 64 << 20, 1


def _max_tile_cols(b_size, itemsize, vmem_limit_bytes, target_block_bytes):
    """Largest lane-dense tile width whose full VMEM footprint (double-buffered
    input block + ~2 f32 working copies) stays well inside the scoped limit."""
    per_col = 2 * b_size * itemsize + 2 * b_size * 4
    budget = int(vmem_limit_bytes * 0.6)
    cols = (budget // per_col) // 128 * 128
    if target_block_bytes is not None:
        cap = (target_block_bytes // (b_size * itemsize)) // 128 * 128
        cols = min(cols, cap)
    return max(128, cols)


def _divisor_tile(n_cols, max_tile, need_even_blocks):
    """Largest 128-multiple divisor of n_cols that is <= max_tile (optionally
    requiring an even block count so both v7x TensorCores get work)."""
    t = max_tile
    while t >= 128:
        if n_cols % t == 0:
            if (not need_even_blocks) or ((n_cols // t) % 2 == 0):
                return t
        t -= 128
    return None


def dirichlet_loss(doc_weights, *, num_topics, lambda_val,
                   target_block_bytes=None, vmem_limit_bytes=None,
                   num_cores=None):
    """doc_weights: (B, S, T) float array. Returns scalar float32 loss."""
    B, S, T = doc_weights.shape
    N = S * T
    alpha = 1.0 / num_topics
    scale = -lambda_val * (alpha - 1.0)      # constant multiplier on the mean
    inv_count = 1.0 / (B * S)                # mean over (B, S)

    auto_limit, auto_cores = _tpu_budget()
    if vmem_limit_bytes is None:
        vmem_limit_bytes = auto_limit
    if num_cores is None:
        num_cores = auto_cores

    # Free contiguous view; softmax over axis 0 is unchanged by fusing (S, T).
    x2d = doc_weights.reshape(B, N)
    itemsize = x2d.dtype.itemsize

    max_tile = _max_tile_cols(B, itemsize, vmem_limit_bytes, target_block_bytes)

    n128 = _round_up(N, 128)
    if n128 <= max_tile:
        tile_n, n_total = n128, n128
    else:
        tile_n = None
        if num_cores >= 2:
            tile_n = _divisor_tile(n128, max_tile, need_even_blocks=True)
        if tile_n is None:
            tile_n = _divisor_tile(n128, max_tile, need_even_blocks=False)
        if tile_n is not None:
            n_total = n128
        else:
            # No 128-multiple divisor <= max_tile: pad out to whole tiles.
            tile_n = max_tile
            n_total = _round_up(n128, tile_n * (2 if num_cores >= 2 else 1))

    n_pad = n_total - N
    if n_pad:
        # Zero-padded columns contribute exactly -B*ln(B) each; corrected below.
        x2d = jnp.pad(x2d, ((0, 0), (0, n_pad)))

    n_blocks = n_total // tile_n
    n_par = 2 if (num_cores >= 2 and n_blocks >= 2 and n_blocks % 2 == 0) else 1
    n_steps = n_blocks // n_par

    kernel = functools.partial(_dirichlet_kernel, b_size=B)

    partials = pl.pallas_call(
        kernel,
        out_shape=jax.ShapeDtypeStruct((n_par, 1), jnp.float32),
        grid_spec=pltpu.PrefetchScalarGridSpec(
            num_scalar_prefetch=0,
            grid=(n_par, n_steps),
            in_specs=[
                pl.BlockSpec((B, tile_n), lambda p, i: (0, p * n_steps + i)),
            ],
            out_specs=pl.BlockSpec(
                (1, 1), lambda p, i: (p, 0), memory_space=pltpu.SMEM
            ),
            scratch_shapes=[pltpu.SMEM((1, 1), jnp.float32)],
        ),
        compiler_params=pltpu.CompilerParams(
            dimension_semantics=("parallel", "arbitrary"),
            vmem_limit_bytes=vmem_limit_bytes,
        ),
        cost_estimate=pl.CostEstimate(
            flops=5 * B * n_total,
            transcendentals=(B + 1) * n_total,
            bytes_accessed=B * n_total * itemsize + n_par * 4,
        ),
    )(x2d)

    total = jnp.sum(partials)
    if n_pad:
        # Each zero-padded column contributed sum_b log(1/B) = -B*ln(B).
        total = total + jnp.float32(n_pad * B * math.log(B))
    avg = total * jnp.float32(inv_count)
    return (jnp.float32(scale) * avg).astype(jnp.float32)


def dirichlet_loss_ref(doc_weights, *, num_topics, lambda_val):
    alpha = 1.0 / num_topics
    logp = jax.nn.log_softmax(doc_weights.astype(jnp.float32), axis=0)
    avg = jnp.mean(jnp.sum(logp, axis=2))
    return -lambda_val * (alpha - 1.0) * avg


if __name__ == "__main__":
    # args: num_topics=32, lambda_val=200.0 (typical lda2vec setting), deterministic.
    num_topics = 32
    lambda_val = 200.0
    key = jax.random.PRNGKey(0)
    k1, k2, k3 = jax.random.split(key, 3)

    # Test 1: small shape, single lane-dense block, auto budget.
    B, S, T = 8, 16, num_topics
    doc_weights = jax.random.normal(k1, (B, S, T), dtype=jnp.float32)
    loss = dirichlet_loss(doc_weights, num_topics=num_topics, lambda_val=lambda_val)
    loss = jax.block_until_ready(loss)
    ref = dirichlet_loss_ref(doc_weights, num_topics=num_topics, lambda_val=lambda_val)
    assert jnp.allclose(loss, ref, rtol=1e-5, atol=1e-4), (loss, ref)

    # Test 2: force multiple grid steps (tiny block budget) to exercise the
    # multi-step SMEM scalar accumulation and (on v7x) the 2-way parallel axis.
    B2, S2, T2 = 8, 32, num_topics
    doc_weights2 = jax.random.normal(k2, (B2, S2, T2), dtype=jnp.float32)
    loss2 = dirichlet_loss(
        doc_weights2, num_topics=num_topics, lambda_val=lambda_val,
        target_block_bytes=8 * 256 * 4,
    )
    loss2 = jax.block_until_ready(loss2)
    ref2 = dirichlet_loss_ref(doc_weights2, num_topics=num_topics, lambda_val=lambda_val)
    assert jnp.allclose(loss2, ref2, rtol=1e-5, atol=1e-4), (loss2, ref2)

    # Test 3: non-128-multiple column count and B not a multiple of 8 —
    # exercises the zero-pad + analytic padded-column correction path.
    B3, S3, T3 = 5, 6, num_topics
    doc_weights3 = jax.random.normal(k3, (B3, S3, T3), dtype=jnp.float32)
    loss3 = dirichlet_loss(doc_weights3, num_topics=num_topics, lambda_val=lambda_val)
    loss3 = jax.block_until_ready(loss3)
    ref3 = dirichlet_loss_ref(doc_weights3, num_topics=num_topics, lambda_val=lambda_val)
    assert jnp.allclose(loss3, ref3, rtol=1e-5, atol=1e-4), (loss3, ref3)

    print("KERNEL_OK")
</pallas_src>

<mosaic_0001>
module attributes {stable_mosaic.version = 11 : i64} {
  func.func @_dirichlet_kernel(%arg0: i32, %arg1: i32, %arg2: memref<8x512xf32, #tpu.memory_space<vmem>>, %arg3: memref<1x1xf32, #tpu.memory_space<smem>>, %arg4: memref<1x1xf32, #tpu.memory_space<smem>>) attributes {dimension_semantics = [#tpu.dimension_semantics<parallel>, #tpu.dimension_semantics<arbitrary>], iteration_bounds = array<i64: 1, 1>, scalar_prefetch = 0 : i64, scratch_operands = 1 : i64, tpu.core_type = #tpu.core_type<tc>, window_params = [{transform_indices = @transform_0, window_bounds = array<i64: 8, 512>}, {transform_indices = @transform_1, window_bounds = array<i64: 1, 1>}]} {
    %c0_i32 = arith.constant 0 : i32
    %0 = arith.cmpi eq, %arg1, %c0_i32 : i32
    %1 = arith.extui %0 : i1 to i32
    %c0_i32_0 = arith.constant 0 : i32
    %2 = arith.cmpi ne, %1, %c0_i32_0 : i32
    scf.if %2 {
      %cst_12 = arith.constant 0.000000e+00 : f32
      %c0_13 = arith.constant 0 : index
      %c0_14 = arith.constant 0 : index
      %29 = memref.load %arg4[%c0_13, %c0_14] : memref<1x1xf32, #tpu.memory_space<smem>>
      memref.store %cst_12, %arg4[%c0_13, %c0_14] : memref<1x1xf32, #tpu.memory_space<smem>>
    } else {
    }
    %c0 = arith.constant 0 : index
    %c0_1 = arith.constant 0 : index
    %3 = vector.load %arg2[%c0, %c0_1] : memref<8x512xf32, #tpu.memory_space<vmem>>, vector<8x512xf32>
    %cst = arith.constant dense<0xFF800000> : vector<512xf32>
    %4 = vector.multi_reduction <maximumf>, %3, %cst [0] : vector<8x512xf32> to vector<512xf32>
    %5 = vector.shape_cast %4 : vector<512xf32> to vector<1x512xf32>
    %6 = vector.broadcast %5 : vector<1x512xf32> to vector<8x512xf32>
    %7 = arith.subf %3, %6 : vector<8x512xf32>
    %8 = math.exp %7 : vector<8x512xf32>
    %cst_2 = arith.constant dense<0.000000e+00> : vector<512xf32>
    %9 = vector.multi_reduction <add>, %8, %cst_2 [0] : vector<8x512xf32> to vector<512xf32>
    %10 = vector.shape_cast %9 : vector<512xf32> to vector<1x512xf32>
    %11 = math.log %10 : vector<1x512xf32>
    %12 = arith.addf %11, %5 : vector<1x512xf32>
    %13 = vector.shape_cast %3 : vector<8x512xf32> to vector<1x8x512xf32>
    %cst_3 = arith.constant dense<0.000000e+00> : vector<1xf32>
    %14 = vector.multi_reduction <add>, %13, %cst_3 [1, 2] : vector<1x8x512xf32> to vector<1xf32>
    %15 = vector.shape_cast %14 : vector<1xf32> to vector<1x1x1xf32>
    %16 = vector.extract %15[0, 0, 0] : f32 from vector<1x1x1xf32>
    %17 = vector.shape_cast %12 : vector<1x512xf32> to vector<1x1x512xf32>
    %cst_4 = arith.constant dense<0.000000e+00> : vector<1xf32>
    %18 = vector.multi_reduction <add>, %17, %cst_4 [1, 2] : vector<1x1x512xf32> to vector<1xf32>
    %19 = vector.shape_cast %18 : vector<1xf32> to vector<1x1x1xf32>
    %20 = vector.extract %19[0, 0, 0] : f32 from vector<1x1x1xf32>
    %cst_5 = arith.constant 8.000000e+00 : f32
    %21 = arith.mulf %cst_5, %20 : f32
    %22 = arith.subf %16, %21 : f32
    %c0_6 = arith.constant 0 : index
    %c0_7 = arith.constant 0 : index
    %23 = memref.load %arg4[%c0_6, %c0_7] : memref<1x1xf32, #tpu.memory_space<smem>>
    %24 = arith.addf %23, %22 : f32
    %c0_8 = arith.constant 0 : index
    %c0_9 = arith.constant 0 : index
    %25 = memref.load %arg4[%c0_8, %c0_9] : memref<1x1xf32, #tpu.memory_space<smem>>
    memref.store %24, %arg4[%c0_8, %c0_9] : memref<1x1xf32, #tpu.memory_space<smem>>
    %c0_i32_10 = arith.constant 0 : i32
    %26 = arith.cmpi eq, %arg1, %c0_i32_10 : i32
    %27 = arith.extui %26 : i1 to i32
    %c0_i32_11 = arith.constant 0 : i32
    %28 = arith.cmpi ne, %27, %c0_i32_11 : i32
    scf.if %28 {
      %c0_12 = arith.constant 0 : index
      %c0_13 = arith.constant 0 : index
      %29 = memref.load %arg4[%c0_12, %c0_13] : memref<1x1xf32, #tpu.memory_space<smem>>
      %c0_14 = arith.constant 0 : index
      %c0_15 = arith.constant 0 : index
      %30 = memref.load %arg3[%c0_14, %c0_15] : memref<1x1xf32, #tpu.memory_space<smem>>
      memref.store %29, %arg3[%c0_14, %c0_15] : memref<1x1xf32, #tpu.memory_space<smem>>
    } else {
    }
    return
  }
  func.func @transform_0(%arg0: i32, %arg1: i32) -> (i32, i32) {
    %c1_i32 = arith.constant 1 : i32
    %0 = arith.muli %arg0, %c1_i32 : i32
    %1 = arith.addi %0, %arg1 : i32
    %c0_i32 = arith.constant 0 : i32
    %c0_i32_0 = arith.constant 0 : i32
    return %c0_i32, %1 : i32, i32
  }
  func.func @transform_1(%arg0: i32, %arg1: i32) -> (i32, i32) {
    %c0_i32 = arith.constant 0 : i32
    %c0_i32_0 = arith.constant 0 : i32
    return %arg0, %c0_i32 : i32, i32
  }
}

</mosaic_0001>

<llo_original>
// kernel: tpu_custom_call.1
$region0: #{tpu_custom_call.1}
  #allocation0 [shape = 'u32[]', space=smem, size = 0x4, offset = 0x4, fixed_abs, tag = 'smem constant byte address 0x4 - core index']
  #allocation1 [shape = 'u32[72,128]{1,0:T(1,128)}', space=vmem, size = 0x9000, scoped, tag = 'internal scratch']
  #allocation2 [shape = 'f32[1,1]{1,0:T(1,128)}', space=smem, size = 0x200, scoped, tag = 'scratch operand']
  %s0 = inlined_call_operand.hbm [shape: f32[8,512], index: 0, kind: input, shape index: {}]
  %s1 = inlined_call_operand.hbm [shape: f32[1,1], index: 1, kind: output, shape index: {}]
  %s2 = sld [smem:[#allocation0]]
  $region26: #{tpu_custom_call.1} parent=0
    _
  %s4 = ssub.s32 1, %s2
  %s5 = scalar_select 0, %s4, %s2
  $region1: #{tpu_custom_call.1} parent=0
    #allocation3 [shape = 'u8[16384]{0}', space=vmem, size = 0x4000, scoped, tag = 'input window, operand 0, single buffered']
    #allocation4 [shape = 's32[1]{0}', space=sflag, size = 0x4, scoped, tag = 'scoped memory for tpu_custom_call.1']
    #allocation5 [shape = 's32[1]{0}', space=sflag, size = 0x4, scoped, tag = 'scoped memory for tpu_custom_call.1']
    #allocation6 [shape = 'u8[512]{0}', space=smem, size = 0x200, scoped, tag = 'output window, operand 0, single buffered']
    %6 = vsyncpa [#allocation4], 0
    %7 = vsyncpa [#allocation5], 0
    // Predicated region
    $region2: #{tpu_custom_call.1} parent=1 // pred_check
      _
    $region3: #{tpu_custom_call.1} parent=1 // pred_check_branch
      %9 = sbr.rel (0) target = $region5
    $region4: #{tpu_custom_call.1} parent=1 // pred_region
      %s10 = sadd.s32 0, 0
      %s11 = smul.u32 4, %s10
      %13 = vsyncadd [#allocation4], 0
      %s14 = smul.addr %s11, 8
      %s15 = scalar_lea.hbm %s0, %s14
      %s17 = sshll.u32 %s15, 4
      %s18 = int_to_ptr.hbm [resolvable:$true] %s17
      %s19 = sshll.u32 [#allocation3], 4
      %s20 = int_to_ptr.vmem [resolvable:$true] %s19
      %22 = dma.hbm_to_vmem [thread:$0]  %s18, 512, %s20, [#allocation4]
    $region5: #{tpu_custom_call.1} parent=1 // pred_fallthru
      _
    // Predicated region
    $region6: #{tpu_custom_call.1} parent=1 // pred_check
      _
    $region7: #{tpu_custom_call.1} parent=1 // pred_check_branch
      %24 = sbr.rel (0) target = $region9
    $region8: #{tpu_custom_call.1} parent=1 // pred_region
      %26 = dma.done [#allocation4], 512
    $region9: #{tpu_custom_call.1} parent=1 // pred_fallthru
      _
    %s27 = sadd.s32 0, 0
    %s28 = smul.u32 4, %s27
    %p29 = scmp.eq.s32.totalorder 0, 0
    // Predicated region
    $region10: #{tpu_custom_call.1} parent=1 // pred_check
      %p30 = pneg %p29
    $region11: #{tpu_custom_call.1} parent=1 // pred_check_branch
      %32 = sbr.rel (%p30) target = $region13
    $region12: #{tpu_custom_call.1} parent=1 // pred_region
      %s33 = scalar_lea.smem [#allocation2], 0
      %34 = sst [smem:[%s33]] 0.0
    $region13: #{tpu_custom_call.1} parent=1 // pred_fallthru
      _
    %v35 = vld [vmem:[#allocation3] sm:$0xff]
    %v36 = vld [vmem:[#allocation3 + $0x8] sm:$0xff]
    %v37 = vld [vmem:[#allocation3 + $0x10] sm:$0xff]
    %v38 = vld [vmem:[#allocation3 + $0x18] sm:$0xff]
    %v39 = vrot.slane %v35, 4
    %v40 = vmax.f32 %v35, %v39
    %v41 = vrot.slane %v40, 2
    %v42 = vmax.f32 %v40, %v41
    %v43 = vrot.slane %v42, 1
    %v44 = vmax.f32 %v42, %v43
    %v45 = vrot.slane %v36, 4
    %v46 = vmax.f32 %v36, %v45
    %v47 = vrot.slane %v46, 2
    %v48 = vmax.f32 %v46, %v47
    %v49 = vrot.slane %v48, 1
    %v50 = vmax.f32 %v48, %v49
    %v51 = vrot.slane %v37, 4
    %v52 = vmax.f32 %v37, %v51
    %v53 = vrot.slane %v52, 2
    %v54 = vmax.f32 %v52, %v53
    %v55 = vrot.slane %v54, 1
    %v56 = vmax.f32 %v54, %v55
    %v57 = vrot.slane %v38, 4
    %v58 = vmax.f32 %v38, %v57
    %v59 = vrot.slane %v58, 2
    %v60 = vmax.f32 %v58, %v59
    %v61 = vrot.slane %v60, 1
    %v62 = vmax.f32 %v60, %v61
    %v63 = vsub.f32 %v35, %v44
    %v64 = vsub.f32 %v36, %v50
    %v65 = vsub.f32 %v37, %v56
    %v66 = vsub.f32 %v38, %v62
    %v67 = vmul.f32 %v63, 1.442695
    %v68 = vpow.pop %v67
    %v69 = vmul.f32 %v64, 1.442695
    %v70 = vpow.pop %v69
    %v71 = vmul.f32 %v65, 1.442695
    %v72 = vpow.pop %v71
    %v73 = vmul.f32 %v66, 1.442695
    %v74 = vpow.pop %v73
    %v75 = vrot.slane %v68, 4
    %v76 = vadd.f32 %v68, %v75
    %v77 = vrot.slane %v76, 2
    %v78 = vadd.f32 %v76, %v77
    %v79 = vrot.slane %v78, 1
    %v80 = vadd.f32 %v78, %v79
    %v81 = vrot.slane %v70, 4
    %v82 = vadd.f32 %v70, %v81
    %v83 = vrot.slane %v82, 2
    %v84 = vadd.f32 %v82, %v83
    %v85 = vrot.slane %v84, 1
    %v86 = vadd.f32 %v84, %v85
    %v87 = vrot.slane %v72, 4
    %v88 = vadd.f32 %v72, %v87
    %v89 = vrot.slane %v88, 2
    %v90 = vadd.f32 %v88, %v89
    %v91 = vrot.slane %v90, 1
    %v92 = vadd.f32 %v90, %v91
    %v93 = vrot.slane %v74, 4
    %v94 = vadd.f32 %v74, %v93
    %v95 = vrot.slane %v94, 2
    %v96 = vadd.f32 %v94, %v95
    %v97 = vrot.slane %v96, 1
    %v98 = vadd.f32 %v96, %v97
    %v99 = vlog2.pop %v80
    %v100 = vmul.f32 %v99, 0.6931472
    %v101 = vlog2.pop %v86
    %v102 = vmul.f32 %v101, 0.6931472
    %v103 = vlog2.pop %v92
    %v104 = vmul.f32 %v103, 0.6931472
    %v105 = vlog2.pop %v98
    %v106 = vmul.f32 %v105, 0.6931472
    %v107 = vadd.f32 %v100, %v44
    %v108 = vadd.f32 %v102, %v50
    %v109 = vadd.f32 %v104, %v56
    %v110 = vadd.f32 %v106, %v62
    %v111 = vadd.f32 %v35, %v36
    %v112 = vadd.f32 %v111, %v37
    %v113 = vadd.f32 %v112, %v38
    %114 = vadd.xlane.f32.xlu0 %v113
    %v115 = vpop.xlane.xlu0 %114
    %v116 = vrot.slane %v115, 4
    %v117 = vadd.f32 %v115, %v116
    %v118 = vrot.slane %v117, 2
    %v119 = vadd.f32 %v117, %v118
    %v120 = vrot.slane %v119, 1
    %v121 = vadd.f32 %v119, %v120
    %s122 = vtos %v121
    %vm123 = vcmask 1040384
    %v124 = vsel %vm123, %v107, 0.0
    %v125 = vsel %vm123, %v108, 0.0
    %v126 = vadd.f32 %v124, %v125
    %v127 = vsel %vm123, %v109, 0.0
    %v128 = vadd.f32 %v126, %v127
    %v129 = vsel %vm123, %v110, 0.0
    %v130 = vadd.f32 %v128, %v129
    %131 = vadd.xlane.f32.xlu0 %v130
    %v132 = vpop.xlane.xlu0 %131
    %v133 = vrot.slane %v132, 4
    %v134 = vadd.f32 %v132, %v133
    %v135 = vrot.slane %v134, 2
    %v136 = vadd.f32 %v134, %v135
    %v137 = vrot.slane %v136, 1
    %v138 = vadd.f32 %v136, %v137
    %s139 = vtos %v138
    %s140 = smul.f32 %s139, 8.0
    %s141 = ssub.f32 %s122, %s140
    %s142 = sld [smem:[#allocation2]]
    %s143 = sadd.f32 %s142, %s141
    %s144 = scalar_lea.smem [#allocation2], 0
    %145 = sst [smem:[%s144]] %s143
    // Predicated region
    $region14: #{tpu_custom_call.1} parent=1 // pred_check
      %p146 = pneg %p29
    $region15: #{tpu_custom_call.1} parent=1 // pred_check_branch
      %148 = sbr.rel (%p146) target = $region17
    $region16: #{tpu_custom_call.1} parent=1 // pred_region
      %s149 = sld [smem:[#allocation2]]
      %s150 = scalar_lea.smem [#allocation6], 0
      %151 = sst [smem:[%s150]] %s149
    $region17: #{tpu_custom_call.1} parent=1 // pred_fallthru
      _
    // Predicated region
    $region18: #{tpu_custom_call.1} parent=1 // pred_check
      _
    $region19: #{tpu_custom_call.1} parent=1 // pred_check_branch
      %153 = sbr.rel (0) target = $region21
    $region20: #{tpu_custom_call.1} parent=1 // pred_region
      %155 = vsyncadd [#allocation5], 0
      %s157 = sshll.u32 %s1, 4
      %s158 = int_to_ptr.hbm [resolvable:$true] %s157
      %160 = dma.smem_to_hbm [#allocation6], 16, %s158, [#allocation5]
    $region21: #{tpu_custom_call.1} parent=1 // pred_fallthru
      _
    // Predicated region
    $region22: #{tpu_custom_call.1} parent=1 // pred_check
      _
    $region23: #{tpu_custom_call.1} parent=1 // pred_check_branch
      %162 = sbr.rel (0) target = $region25
    $region24: #{tpu_custom_call.1} parent=1 // pred_region
      %164 = dma.done [#allocation5], 16
    $region25: #{tpu_custom_call.1} parent=1 // pred_fallthru
      _
    %165 = sfence
    %166 = vsyncpa [#allocation4], 1
    %167 = vsyncpa [#allocation5], 1

</llo_original>
